<compile_context>
chip_gen: v5e
topology: v5e:2x2
jax: 0.10.0
libtpu: 0.0.40
codegen_flags: <defaults>
</compile_context>

<pallas_src>
import functools

import jax
import jax.numpy as jnp
from jax.experimental import pallas as pl
from jax.experimental.pallas import tpu as pltpu


LN_EPS = 1e-5  # torch nn.LayerNorm default

# Column indices inside the packed (H1, 8) parameter slab.
_B_EFF, _G1, _BE1, _B2, _G2, _BE2, _W3, _B3 = range(8)


def _layer_norm_cols(x, gamma, beta):
    """LayerNorm over the feature axis (axis 0) of a (features, batch) tile.

    Single-pass statistics: var = E[x^2] - mu^2 (clamped at 0)."""
    mu = jnp.mean(x, axis=0, keepdims=True)
    ex2 = jnp.mean(x * x, axis=0, keepdims=True)
    var = jnp.maximum(ex2 - mu * mu, 0.0)
    inv = jax.lax.rsqrt(var + LN_EPS)
    return (x - mu) * inv * gamma + beta


def value_network_kernel(x_ref, w1_ref, w2_ref, cols_ref, out_ref, *, hidden_2):
    """One batch tile.

    x_ref    : (TB, D_in) bf16 row-major state tile (ragged tail padded).
    w1_ref   : (H1, D_in) bf16 folded seq_model+linear1 weight.
    w2_ref   : (H2, H1)   bf16.
    cols_ref : (H1, 8)    f32 packed column params (biases / LN affine / head).
    out_ref  : (1, TB)    f32 value row (lane-dense store).
    """
    cols = cols_ref[...]
    b_eff = cols[:, _B_EFF:_B_EFF + 1]
    g1, be1 = cols[:, _G1:_G1 + 1], cols[:, _BE1:_BE1 + 1]
    b2 = cols[:hidden_2, _B2:_B2 + 1]
    g2, be2 = cols[:hidden_2, _G2:_G2 + 1], cols[:hidden_2, _BE2:_BE2 + 1]
    w3 = cols[:hidden_2, _W3:_W3 + 1]
    b3 = cols[0:1, _B3:_B3 + 1]

    x = x_ref[...]                                           # (TB, D_in) bf16

    # (seq_model . linear1) folded: h1 = W_eff @ x^T + b_eff. Contracting on
    # d_in keeps the result feature-major (H1, TB), so the batch sits on the
    # 128-wide lane axis; the tiny (TB, D_in) operand transpose rides the XLU.
    h1 = jax.lax.dot_general(
        w1_ref[...], x, (((1,), (1,)), ((), ())),
        preferred_element_type=jnp.float32) + b_eff          # (H1, TB) f32
    h1 = jnp.maximum(_layer_norm_cols(h1, g1, be1), 0.0)     # LN -> ReLU

    # linear2 -> LayerNorm -> ReLU
    h2 = jnp.dot(w2_ref[...], h1.astype(w2_ref.dtype),
                 preferred_element_type=jnp.float32) + b2    # (H2, TB) f32
    h2 = jnp.maximum(_layer_norm_cols(h2, g2, be2), 0.0)

    # linear3 (scalar value per batch column): keep the N=1 projection off the
    # MXU — VPU multiply + sublane reduction, lands lane-dense in (1, TB).
    v = jnp.sum(h2 * w3, axis=0, keepdims=True) + b3
    out_ref[...] = v.astype(out_ref.dtype)


def _round_up(x, m):
    return (x + m - 1) // m * m


def prepare_params(params, matmul_dtype=jnp.bfloat16):
    """One-time parameter prep (hoisted out of the per-call path; cache this).

    Folds the (placeholder linear) seq_model into linear1 and packs every
    per-feature column parameter into one (H1, 8) f32 slab.
    """
    (w_seq, b_seq, w1, b1, g1, be1, w2, b2, g2, be2, w3, b3) = params
    h1 = w1.shape[1]
    h2 = w2.shape[1]

    w_eff = (w_seq @ w1).T                                   # (H1, D_in) f32
    b_eff = (b_seq @ w1 + b1).reshape(h1)                    # (H1,)

    cols = jnp.zeros((h1, 8), jnp.float32)
    cols = cols.at[:, _B_EFF].set(b_eff)
    cols = cols.at[:, _G1].set(g1.reshape(-1))
    cols = cols.at[:, _BE1].set(be1.reshape(-1))
    cols = cols.at[:h2, _B2].set(b2.reshape(-1))
    cols = cols.at[:h2, _G2].set(g2.reshape(-1))
    cols = cols.at[:h2, _BE2].set(be2.reshape(-1))
    cols = cols.at[:h2, _W3].set(w3.reshape(-1))
    cols = cols.at[0, _B3].set(b3.reshape(-1)[0])

    return (w_eff.astype(matmul_dtype),                      # (H1, D_in)
            w2.T.astype(matmul_dtype),                       # (H2, H1)
            cols)                                            # (H1, 8) f32


def value_network_forward(state, prepped, *, batch_tile=1024):
    """state: (B, input_dim) -> (B, 1) f32 value.  `prepped` = prepare_params().

    The state is cast to the matmul dtype (bf16) here; in a real pipeline fuse
    that cast into the producer (keep the activation bf16 upstream) so the
    kernel's dominant HBM stream is halved without an extra wrapper pass.
    """
    w_eff, w2_t, cols = prepped
    B, d_in = state.shape
    h1_dim, h2_dim = w_eff.shape[0], w2_t.shape[0]
    assert w_eff.shape[1] == d_in and w2_t.shape[1] == h1_dim

    assert batch_tile % 128 == 0, "batch_tile must be lane-aligned"
    tb = min(batch_tile, _round_up(B, 128))
    if B >= 256:
        # Keep >= 2 grid steps so the "parallel" batch axis can shard across
        # v7x's two TensorCores (harmless on single-TC v5e/v6e).
        tb = min(tb, _round_up(pl.cdiv(B, 2), 128))
    n_tiles = pl.cdiv(B, tb)

    x = state.astype(w_eff.dtype)   # bf16 MXU operand (ideally fused upstream)

    def const(shape):
        return pl.BlockSpec(shape, lambda i: (0, 0))

    in_specs = [
        pl.BlockSpec((tb, d_in), lambda i: (i, 0)),   # row-major state tiles
        const(w_eff.shape),                           # weights/params: DMA'd
        const(w2_t.shape),                            # once, VMEM-resident
        const(cols.shape),
    ]
    out_spec = pl.BlockSpec((1, tb), lambda i: (0, i))

    param_bytes = sum(int(a.size) * a.dtype.itemsize for a in (w_eff, w2_t, cols))
    cost = pl.CostEstimate(
        flops=2 * B * (d_in * h1_dim + h1_dim * h2_dim + h2_dim),
        transcendentals=2 * B,                        # one rsqrt per LN per column
        bytes_accessed=int(x.size) * x.dtype.itemsize + B * 4 + param_bytes,
    )

    out = pl.pallas_call(
        functools.partial(value_network_kernel, hidden_2=h2_dim),
        out_shape=jax.ShapeDtypeStruct((1, B), jnp.float32),
        grid_spec=pltpu.PrefetchScalarGridSpec(
            num_scalar_prefetch=0,
            grid=(n_tiles,),
            in_specs=in_specs,
            out_specs=out_spec,
        ),
        compiler_params=pltpu.CompilerParams(
            dimension_semantics=("parallel",)),       # megacore-shards batch (v7x)
        cost_estimate=cost,
    )(x, w_eff, w2_t, cols)

    return out[0, :, None]


def init_params(key, input_dim, seq_output_size, hidden_1):
    """Deterministic parameter init mirroring the module's __init__ shapes.

    norm_layer == 'ln' branch: LayerNorm(hidden_1), LayerNorm(hidden_2),
    elementwise_affine=True (gamma=1, beta=0 at init, the torch default).
    """
    hidden_2 = hidden_1 // 2
    ks = jax.random.split(key, 4)

    def lin(k, fan_in, fan_out):
        bound = 1.0 / jnp.sqrt(jnp.float32(fan_in))
        kw, kb = jax.random.split(k)
        w = jax.random.uniform(kw, (fan_in, fan_out), jnp.float32, -bound, bound)
        b = jax.random.uniform(kb, (1, fan_out), jnp.float32, -bound, bound)
        return w, b

    w_seq, b_seq = lin(ks[0], input_dim, seq_output_size)
    w1, b1 = lin(ks[1], seq_output_size, hidden_1)
    w2, b2 = lin(ks[2], hidden_1, hidden_2)
    w3, b3 = lin(ks[3], hidden_2, 1)

    g1 = jnp.ones((1, hidden_1), jnp.float32)
    be1 = jnp.zeros((1, hidden_1), jnp.float32)
    g2 = jnp.ones((1, hidden_2), jnp.float32)
    be2 = jnp.zeros((1, hidden_2), jnp.float32)

    return (w_seq, b_seq, w1, b1, g1, be1, w2, b2, g2, be2, w3, b3)


def reference_forward(state, params):
    """Original (unfolded) module semantics in full f32."""
    (w_seq, b_seq, w1, b1, g1, be1, w2, b2, g2, be2, w3, b3) = params

    def ln(x, g, be):
        mu = jnp.mean(x, axis=-1, keepdims=True)
        var = jnp.mean(jnp.square(x - mu), axis=-1, keepdims=True)
        return (x - mu) * jax.lax.rsqrt(var + LN_EPS) * g + be

    s = state @ w_seq + b_seq
    h1 = jnp.maximum(ln(s @ w1 + b1, g1, be1), 0.0)
    h2 = jnp.maximum(ln(h1 @ w2 + b2, g2, be2), 0.0)
    return h2 @ w3 + b3


def reference_forward_prepped(state, prepped):
    """Pure-JAX mirror of the kernel's folded bf16-operand math (tight check)."""
    w_eff, w2_t, cols = prepped
    h2d = w2_t.shape[0]

    def ln(x, g, be):
        mu = jnp.mean(x, axis=-1, keepdims=True)
        ex2 = jnp.mean(x * x, axis=-1, keepdims=True)
        var = jnp.maximum(ex2 - mu * mu, 0.0)
        return (x - mu) * jax.lax.rsqrt(var + LN_EPS) * g + be

    x = state.astype(w_eff.dtype)
    h1 = jnp.dot(x, w_eff.T, preferred_element_type=jnp.float32) + cols[:, _B_EFF]
    h1 = jnp.maximum(ln(h1, cols[:, _G1], cols[:, _BE1]), 0.0)
    h2 = jnp.dot(h1.astype(w2_t.dtype), w2_t.T,
                 preferred_element_type=jnp.float32) + cols[:h2d, _B2]
    h2 = jnp.maximum(ln(h2, cols[:h2d, _G2], cols[:h2d, _BE2]), 0.0)
    return h2 @ cols[:h2d, _W3:_W3 + 1] + cols[0, _B3]


if __name__ == "__main__":
    # Shapes consistent with the module's forward: raw state feature dim=24,
    # seq_output_size=32, hidden_size=32 (-> hidden_2=16), output dim=1.
    INPUT_DIM, SEQ_OUT, HIDDEN_1 = 24, 32, 32

    key = jax.random.PRNGKey(0)
    k_state, k_state2, k_params = jax.random.split(key, 3)

    params = init_params(k_params, INPUT_DIM, SEQ_OUT, HIDDEN_1)
    prepped = prepare_params(params)          # one-time param prep (cacheable)

    # Small batch: single (ragged) tile.
    B = 8
    state = jax.random.normal(k_state, (B, INPUT_DIM), jnp.float32)
    out = jax.block_until_ready(value_network_forward(state, prepped))
    assert out.shape == (B, 1), out.shape

    # Tight check vs a reference mirroring the kernel's folded bf16 math.
    ref_tight = reference_forward_prepped(state, prepped)
    assert jnp.allclose(out, ref_tight, atol=2e-3, rtol=2e-3), (
        float(jnp.max(jnp.abs(out - ref_tight))))
    # Loose check vs the unfolded full-f32 module (bf16 operand rounding only).
    ref_f32 = reference_forward(state, params)
    assert jnp.allclose(out, ref_f32, atol=5e-2, rtol=5e-2), (
        float(jnp.max(jnp.abs(out - ref_f32))))

    # Larger ragged batch: exercises >= 2 grid steps (v7x megacore path) and
    # the masked last tile.
    B2 = 300
    state2 = jax.random.normal(k_state2, (B2, INPUT_DIM), jnp.float32)
    out2 = jax.block_until_ready(value_network_forward(state2, prepped))
    assert out2.shape == (B2, 1), out2.shape
    ref2 = reference_forward_prepped(state2, prepped)
    assert jnp.allclose(out2, ref2, atol=2e-3, rtol=2e-3), (
        float(jnp.max(jnp.abs(out2 - ref2))))

    print("KERNEL_OK")
</pallas_src>

<mosaic_0001>
module attributes {stable_mosaic.version = 11 : i64} {
  func.func @value_network_kernel(%arg0: i32, %arg1: memref<128x24xbf16, #tpu.memory_space<vmem>>, %arg2: memref<32x24xbf16, #tpu.memory_space<vmem>>, %arg3: memref<16x32xbf16, #tpu.memory_space<vmem>>, %arg4: memref<32x8xf32, #tpu.memory_space<vmem>>, %arg5: memref<1x128xf32, #tpu.memory_space<vmem>>) attributes {dimension_semantics = [#tpu.dimension_semantics<parallel>], iteration_bounds = array<i64: 1>, scalar_prefetch = 0 : i64, scratch_operands = 0 : i64, tpu.core_type = #tpu.core_type<tc>, window_params = [{transform_indices = @transform_0, window_bounds = array<i64: 128, 24>}, {pipeline_mode = #tpu.pipeline_mode<synchronous>, transform_indices = @transform_1, window_bounds = array<i64: 32, 24>}, {pipeline_mode = #tpu.pipeline_mode<synchronous>, transform_indices = @transform_2, window_bounds = array<i64: 16, 32>}, {pipeline_mode = #tpu.pipeline_mode<synchronous>, transform_indices = @transform_3, window_bounds = array<i64: 32, 8>}, {transform_indices = @transform_4, window_bounds = array<i64: 1, 128>}]} {
    %c0 = arith.constant 0 : index
    %c0_0 = arith.constant 0 : index
    %0 = vector.load %arg4[%c0, %c0_0] : memref<32x8xf32, #tpu.memory_space<vmem>>, vector<32x8xf32>
    %1 = vector.extract_strided_slice %0 {offsets = [0, 0], sizes = [32, 1], strides = [1, 1]} : vector<32x8xf32> to vector<32x1xf32>
    %2 = vector.extract_strided_slice %0 {offsets = [0, 1], sizes = [32, 1], strides = [1, 1]} : vector<32x8xf32> to vector<32x1xf32>
    %3 = vector.extract_strided_slice %0 {offsets = [0, 2], sizes = [32, 1], strides = [1, 1]} : vector<32x8xf32> to vector<32x1xf32>
    %4 = vector.extract_strided_slice %0 {offsets = [0, 3], sizes = [16, 1], strides = [1, 1]} : vector<32x8xf32> to vector<16x1xf32>
    %5 = vector.extract_strided_slice %0 {offsets = [0, 4], sizes = [16, 1], strides = [1, 1]} : vector<32x8xf32> to vector<16x1xf32>
    %6 = vector.extract_strided_slice %0 {offsets = [0, 5], sizes = [16, 1], strides = [1, 1]} : vector<32x8xf32> to vector<16x1xf32>
    %7 = vector.extract_strided_slice %0 {offsets = [0, 6], sizes = [16, 1], strides = [1, 1]} : vector<32x8xf32> to vector<16x1xf32>
    %8 = vector.extract_strided_slice %0 {offsets = [0, 7], sizes = [1, 1], strides = [1, 1]} : vector<32x8xf32> to vector<1x1xf32>
    %c0_1 = arith.constant 0 : index
    %c0_2 = arith.constant 0 : index
    %9 = vector.load %arg1[%c0_1, %c0_2] : memref<128x24xbf16, #tpu.memory_space<vmem>>, vector<128x24xbf16>
    %c0_3 = arith.constant 0 : index
    %c0_4 = arith.constant 0 : index
    %10 = vector.load %arg2[%c0_3, %c0_4] : memref<32x24xbf16, #tpu.memory_space<vmem>>, vector<32x24xbf16>
    %cst = arith.constant dense<0.000000e+00> : vector<32x128xf32>
    %11 = tpu.matmul %10, %9, %cst {dimension_numbers = #tpu.dot_dimension_numbers<[1], [1], [0], [0], [0, 0, 1, 0], [], []>} : vector<32x24xbf16>, vector<128x24xbf16>, vector<32x128xf32> -> vector<32x128xf32>
    %12 = vector.broadcast %1 : vector<32x1xf32> to vector<32x128xf32>
    %13 = arith.addf %11, %12 : vector<32x128xf32>
    %cst_5 = arith.constant dense<0.000000e+00> : vector<128xf32>
    %14 = vector.multi_reduction <add>, %13, %cst_5 [0] : vector<32x128xf32> to vector<128xf32>
    %15 = vector.shape_cast %14 : vector<128xf32> to vector<1x128xf32>
    %cst_6 = arith.constant 3.200000e+01 : f32
    %16 = vector.broadcast %cst_6 : f32 to vector<1x128xf32>
    %17 = arith.divf %15, %16 : vector<1x128xf32>
    %18 = arith.mulf %13, %13 : vector<32x128xf32>
    %cst_7 = arith.constant dense<0.000000e+00> : vector<128xf32>
    %19 = vector.multi_reduction <add>, %18, %cst_7 [0] : vector<32x128xf32> to vector<128xf32>
    %20 = vector.shape_cast %19 : vector<128xf32> to vector<1x128xf32>
    %cst_8 = arith.constant 3.200000e+01 : f32
    %21 = vector.broadcast %cst_8 : f32 to vector<1x128xf32>
    %22 = arith.divf %20, %21 : vector<1x128xf32>
    %23 = arith.mulf %17, %17 : vector<1x128xf32>
    %24 = arith.subf %22, %23 : vector<1x128xf32>
    %cst_9 = arith.constant 0.000000e+00 : f32
    %25 = vector.broadcast %cst_9 : f32 to vector<1x128xf32>
    %26 = arith.maximumf %24, %25 : vector<1x128xf32>
    %cst_10 = arith.constant 9.99999974E-6 : f32
    %27 = vector.broadcast %cst_10 : f32 to vector<1x128xf32>
    %28 = arith.addf %26, %27 : vector<1x128xf32>
    %29 = math.rsqrt %28 : vector<1x128xf32>
    %30 = vector.broadcast %17 : vector<1x128xf32> to vector<32x128xf32>
    %31 = arith.subf %13, %30 : vector<32x128xf32>
    %32 = vector.broadcast %29 : vector<1x128xf32> to vector<32x128xf32>
    %33 = arith.mulf %31, %32 : vector<32x128xf32>
    %34 = vector.broadcast %2 : vector<32x1xf32> to vector<32x128xf32>
    %35 = arith.mulf %33, %34 : vector<32x128xf32>
    %36 = vector.broadcast %3 : vector<32x1xf32> to vector<32x128xf32>
    %37 = arith.addf %35, %36 : vector<32x128xf32>
    %cst_11 = arith.constant 0.000000e+00 : f32
    %38 = vector.broadcast %cst_11 : f32 to vector<32x128xf32>
    %39 = arith.maximumf %37, %38 : vector<32x128xf32>
    %c0_12 = arith.constant 0 : index
    %c0_13 = arith.constant 0 : index
    %40 = vector.load %arg3[%c0_12, %c0_13] : memref<16x32xbf16, #tpu.memory_space<vmem>>, vector<16x32xbf16>
    %41 = arith.truncf %39 : vector<32x128xf32> to vector<32x128xbf16>
    %cst_14 = arith.constant dense<0.000000e+00> : vector<16x128xf32>
    %42 = tpu.matmul %40, %41, %cst_14 {dimension_numbers = #tpu.dot_dimension_numbers<[1], [0], [0], [1], [0, 0, 1, 1], [], []>} : vector<16x32xbf16>, vector<32x128xbf16>, vector<16x128xf32> -> vector<16x128xf32>
    %43 = vector.broadcast %4 : vector<16x1xf32> to vector<16x128xf32>
    %44 = arith.addf %42, %43 : vector<16x128xf32>
    %cst_15 = arith.constant dense<0.000000e+00> : vector<128xf32>
    %45 = vector.multi_reduction <add>, %44, %cst_15 [0] : vector<16x128xf32> to vector<128xf32>
    %46 = vector.shape_cast %45 : vector<128xf32> to vector<1x128xf32>
    %cst_16 = arith.constant 1.600000e+01 : f32
    %47 = vector.broadcast %cst_16 : f32 to vector<1x128xf32>
    %48 = arith.divf %46, %47 : vector<1x128xf32>
    %49 = arith.mulf %44, %44 : vector<16x128xf32>
    %cst_17 = arith.constant dense<0.000000e+00> : vector<128xf32>
    %50 = vector.multi_reduction <add>, %49, %cst_17 [0] : vector<16x128xf32> to vector<128xf32>
    %51 = vector.shape_cast %50 : vector<128xf32> to vector<1x128xf32>
    %cst_18 = arith.constant 1.600000e+01 : f32
    %52 = vector.broadcast %cst_18 : f32 to vector<1x128xf32>
    %53 = arith.divf %51, %52 : vector<1x128xf32>
    %54 = arith.mulf %48, %48 : vector<1x128xf32>
    %55 = arith.subf %53, %54 : vector<1x128xf32>
    %cst_19 = arith.constant 0.000000e+00 : f32
    %56 = vector.broadcast %cst_19 : f32 to vector<1x128xf32>
    %57 = arith.maximumf %55, %56 : vector<1x128xf32>
    %cst_20 = arith.constant 9.99999974E-6 : f32
    %58 = vector.broadcast %cst_20 : f32 to vector<1x128xf32>
    %59 = arith.addf %57, %58 : vector<1x128xf32>
    %60 = math.rsqrt %59 : vector<1x128xf32>
    %61 = vector.broadcast %48 : vector<1x128xf32> to vector<16x128xf32>
    %62 = arith.subf %44, %61 : vector<16x128xf32>
    %63 = vector.broadcast %60 : vector<1x128xf32> to vector<16x128xf32>
    %64 = arith.mulf %62, %63 : vector<16x128xf32>
    %65 = vector.broadcast %5 : vector<16x1xf32> to vector<16x128xf32>
    %66 = arith.mulf %64, %65 : vector<16x128xf32>
    %67 = vector.broadcast %6 : vector<16x1xf32> to vector<16x128xf32>
    %68 = arith.addf %66, %67 : vector<16x128xf32>
    %cst_21 = arith.constant 0.000000e+00 : f32
    %69 = vector.broadcast %cst_21 : f32 to vector<16x128xf32>
    %70 = arith.maximumf %68, %69 : vector<16x128xf32>
    %71 = vector.broadcast %7 : vector<16x1xf32> to vector<16x128xf32>
    %72 = arith.mulf %70, %71 : vector<16x128xf32>
    %cst_22 = arith.constant dense<0.000000e+00> : vector<128xf32>
    %73 = vector.multi_reduction <add>, %72, %cst_22 [0] : vector<16x128xf32> to vector<128xf32>
    %74 = vector.shape_cast %73 : vector<128xf32> to vector<1x128xf32>
    %75 = vector.broadcast %8 : vector<1x1xf32> to vector<1x128xf32>
    %76 = arith.addf %74, %75 : vector<1x128xf32>
    %c0_23 = arith.constant 0 : index
    %c0_24 = arith.constant 0 : index
    %77 = vector.load %arg5[%c0_23, %c0_24] : memref<1x128xf32, #tpu.memory_space<vmem>>, vector<1x128xf32>
    tpu.vector_store %arg5[%c0_23, %c0_24], %76 {strides = array<i32>} : memref<1x128xf32, #tpu.memory_space<vmem>>, vector<1x128xf32>,
    return
  }
  func.func @transform_0(%arg0: i32) -> (i32, i32) {
    %c0_i32 = arith.constant 0 : i32
    %c0_i32_0 = arith.constant 0 : i32
    return %arg0, %c0_i32 : i32, i32
  }
  func.func @transform_1(%arg0: i32) -> (i32, i32) {
    %c0_i32 = arith.constant 0 : i32
    %c0_i32_0 = arith.constant 0 : i32
    %c0_i32_1 = arith.constant 0 : i32
    return %c0_i32, %c0_i32_0 : i32, i32
  }
  func.func @transform_2(%arg0: i32) -> (i32, i32) {
    %c0_i32 = arith.constant 0 : i32
    %c0_i32_0 = arith.constant 0 : i32
    %c0_i32_1 = arith.constant 0 : i32
    return %c0_i32, %c0_i32_0 : i32, i32
  }
  func.func @transform_3(%arg0: i32) -> (i32, i32) {
    %c0_i32 = arith.constant 0 : i32
    %c0_i32_0 = arith.constant 0 : i32
    %c0_i32_1 = arith.constant 0 : i32
    return %c0_i32, %c0_i32_0 : i32, i32
  }
  func.func @transform_4(%arg0: i32) -> (i32, i32) {
    %c0_i32 = arith.constant 0 : i32
    %c0_i32_0 = arith.constant 0 : i32
    return %c0_i32, %arg0 : i32, i32
  }
}

</mosaic_0001>

<llo_original>
// kernel: tpu_custom_call.1
$region0: #{tpu_custom_call.1}
  #allocation0 [shape = 'u32[]', space=smem, size = 0x4, offset = 0x4, fixed_abs, tag = 'smem constant byte address 0x4 - core index']
  #allocation1 [shape = 'u32[72,128]{1,0:T(1,128)}', space=vmem, size = 0x9000, scoped, tag = 'internal scratch']
  %s0 = inlined_call_operand.vmem [shape: bf16[8,24], index: 0, kind: input, shape index: {}]
  %s1 = inlined_call_operand.vmem [shape: bf16[32,24], index: 1, kind: input, shape index: {}]
  %s2 = inlined_call_operand.vmem [shape: bf16[16,32], index: 2, kind: input, shape index: {}]
  %s3 = inlined_call_operand.vmem [shape: f32[32,8], index: 3, kind: input, shape index: {}]
  %s4 = inlined_call_operand.hbm [shape: f32[1,8], index: 4, kind: output, shape index: {}]
  %s5 = sld [smem:[#allocation0]]
  $region26: #{tpu_custom_call.1} parent=0
    _
  %s7 = ssub.s32 1, %s5
  %s8 = scalar_select 0, %s7, %s5
  $region1: #{tpu_custom_call.1} parent=0
    #allocation2 [shape = 'u8[512]{0}', space=vmem, size = 0x400, scoped, tag = 'output window, operand 0, single buffered']
    #allocation3 [shape = 's32[1]{0}', space=sflag, size = 0x4, scoped, tag = 'scoped memory for tpu_custom_call.1']
    %9 = vsyncpa [#allocation3], 0
    // Predicated region
    $region2: #{tpu_custom_call.1} parent=1 // pred_check
      _
    $region3: #{tpu_custom_call.1} parent=1 // pred_check_branch
      %11 = sbr.rel (0) target = $region5
    $region4: #{tpu_custom_call.1} parent=1 // pred_region
      _
    $region5: #{tpu_custom_call.1} parent=1 // pred_fallthru
      _
    // Predicated region
    $region6: #{tpu_custom_call.1} parent=1 // pred_check
      _
    $region7: #{tpu_custom_call.1} parent=1 // pred_check_branch
      %13 = sbr.rel (0) target = $region9
    $region8: #{tpu_custom_call.1} parent=1 // pred_region
      _
    $region9: #{tpu_custom_call.1} parent=1 // pred_fallthru
      _
    // Predicated region
    $region10: #{tpu_custom_call.1} parent=1 // pred_check
      _
    $region11: #{tpu_custom_call.1} parent=1 // pred_check_branch
      %15 = sbr.rel (0) target = $region13
    $region12: #{tpu_custom_call.1} parent=1 // pred_region
      _
    $region13: #{tpu_custom_call.1} parent=1 // pred_fallthru
      _
    // Predicated region
    $region14: #{tpu_custom_call.1} parent=1 // pred_check
      _
    $region15: #{tpu_custom_call.1} parent=1 // pred_check_branch
      %17 = sbr.rel (0) target = $region17
    $region16: #{tpu_custom_call.1} parent=1 // pred_region
      _
    $region17: #{tpu_custom_call.1} parent=1 // pred_fallthru
      _
    %v19 = vld [vmem:[%s3] sm:$0xff]
    %v20 = vld [vmem:[%s3 + $0x8] sm:$0xff]
    %v21 = vld [vmem:[%s3 + $0x10] sm:$0xff]
    %v22 = vld [vmem:[%s3 + $0x18] sm:$0xff]
    %v23 = vld [vmem:[%s0] sm:$0xf]
    %v24 = vld [vmem:[%s0 + $0x4] sm:$0xf]
    %v25 = vld [vmem:[%s0 + $0x8] sm:$0xf]
    %v26 = vld [vmem:[%s0 + $0xc] sm:$0xf]
    %v27 = vld [vmem:[%s0 + $0x10] sm:$0xf]
    %v28 = vld [vmem:[%s0 + $0x14] sm:$0xf]
    %v29 = vld [vmem:[%s0 + $0x18] sm:$0xf]
    %v30 = vld [vmem:[%s0 + $0x1c] sm:$0xf]
    %v31 = vld [vmem:[%s0 + $0x20] sm:$0xf]
    %v32 = vld [vmem:[%s0 + $0x24] sm:$0xf]
    %v33 = vld [vmem:[%s0 + $0x28] sm:$0xf]
    %v34 = vld [vmem:[%s0 + $0x2c] sm:$0xf]
    %v35 = vld [vmem:[%s0 + $0x30] sm:$0xf]
    %v36 = vld [vmem:[%s0 + $0x34] sm:$0xf]
    %v37 = vld [vmem:[%s0 + $0x38] sm:$0xf]
    %v38 = vld [vmem:[%s0 + $0x3c] sm:$0xf]
    %v39 = vld [vmem:[%s1] sm:$0xf]
    %v40 = vld [vmem:[%s1 + $0x4] sm:$0xf]
    %v41 = vld [vmem:[%s1 + $0x8] sm:$0xf]
    %v42 = vld [vmem:[%s1 + $0xc] sm:$0xf]
    %44 = vset.pattern.permute.xlu0 0
    %45 = vperm.xlu0 %44, %v19
    %v46 = vpop.permute.xlu0 %45
    %49 = vset.pattern.permute.xlu0 0
    %50 = vperm.xlu0 %49, %v20
    %v51 = vpop.permute.xlu0 %50
    %54 = vset.pattern.permute.xlu0 0
    %55 = vperm.xlu0 %54, %v21
    %v56 = vpop.permute.xlu0 %55
    %59 = vset.pattern.permute.xlu0 0
    %60 = vperm.xlu0 %59, %v22
    %v61 = vpop.permute.xlu0 %60
    %v67 = vunpack.c.l.b16 %v39
    %v68 = vunpack.c.l.b16 %v40
    %v69 = vunpack.c.l.b16 %v41
    %v70 = vunpack.c.l.b16 %v42
    %v71 = vpack.c.b16 %v68, %v67
    %v72 = vpack.c.b16 %v70, %v69
    %v89 = vunpack.c.l.b16 %v23
    %v90 = vunpack.c.l.b16 %v24
    %v91 = vunpack.c.l.b16 %v25
    %v92 = vunpack.c.l.b16 %v26
    %v93 = vunpack.c.l.b16 %v27
    %v94 = vunpack.c.l.b16 %v28
    %v95 = vunpack.c.l.b16 %v29
    %v96 = vunpack.c.l.b16 %v30
    %v97 = vunpack.c.l.b16 %v31
    %v98 = vunpack.c.l.b16 %v32
    %v99 = vunpack.c.l.b16 %v33
    %v100 = vunpack.c.l.b16 %v34
    %v101 = vunpack.c.l.b16 %v35
    %v102 = vunpack.c.l.b16 %v36
    %v103 = vunpack.c.l.b16 %v37
    %v104 = vunpack.c.l.b16 %v38
    %v105 = vpack.c.b16 %v90, %v89
    %v106 = vpack.c.b16 %v92, %v91
    %v107 = vpack.c.b16 %v94, %v93
    %v108 = vpack.c.b16 %v96, %v95
    %v109 = vpack.c.b16 %v98, %v97
    %v110 = vpack.c.b16 %v100, %v99
    %v111 = vpack.c.b16 %v102, %v101
    %v112 = vpack.c.b16 %v104, %v103
    %vm113 = vcmask 195584
    %v115 = vsel %vm113, %v71, 0
    %v118 = vsel %vm113, %v72, 0
    %v121 = vsel %vm113, %v105, 0
    %v124 = vsel %vm113, %v106, 0
    %v127 = vsel %vm113, %v107, 0
    %v130 = vsel %vm113, %v108, 0
    %v133 = vsel %vm113, %v109, 0
    %v136 = vsel %vm113, %v110, 0
    %v139 = vsel %vm113, %v111, 0
    %v142 = vsel %vm113, %v112, 0
    %144 = vmatpush.bf16.xpose.msra.mxu0 %v142
    %145 = vmatpush.bf16.xpose.msra.mxu0 %v139
    %146 = vmatpush.bf16.xpose.msra.mxu0 %v136
    %147 = vmatpush.bf16.xpose.msra.mxu0 %v133
    %148 = vmatpush.bf16.xpose.msra.mxu0 %v130
    %149 = vmatpush.bf16.xpose.msra.mxu0 %v127
    %150 = vmatpush.bf16.xpose.msra.mxu0 %v124
    %151 = vmatpush.bf16.xpose.msra.mxu0 %v121
    %152 = vmatmul.bf16.gmra.mxu0 %v115
    %v153 = vpop.f32.mrf.mxu0
    %v154 = vadd.f32 %v46, %v153
    %v155 = vpop.f32.mrf.mxu0
    %v156 = vadd.f32 %v51, %v155
    %157 = vmatmul.bf16.gmra.mxu0 %v118
    %v158 = vpop.f32.mrf.mxu0
    %v159 = vadd.f32 %v56, %v158
    %v160 = vpop.f32.mrf.mxu0
    %v161 = vadd.f32 %v61, %v160
    %162 = vdwg.mxu0
    %v163 = vadd.f32 %v154, %v156
    %v164 = vadd.f32 %v163, %v159
    %v165 = vadd.f32 %v164, %v161
    %v166 = vrot.slane %v165, 4
    %v167 = vadd.f32 %v165, %v166
    %v168 = vrot.slane %v167, 2
    %v169 = vadd.f32 %v167, %v168
    %v170 = vrot.slane %v169, 1
    %v171 = vadd.f32 %v169, %v170
    %v172 = vrcp.pop 32.0
    %v173 = vmul.f32 32.0, %v172
    %v174 = vsub.f32 1.0, %v173
    %v175 = vmul.f32 %v172, %v174
    %v176 = vadd.f32 %v172, %v175
    %vm177 = vweird.f32 %v172
    %v178 = vsel %vm177, %v172, %v176
    %v179 = vmul.f32 %v171, %v178
    %v180 = vmul.f32 %v154, %v154
    %v181 = vmul.f32 %v156, %v156
    %v182 = vmul.f32 %v159, %v159
    %v183 = vmul.f32 %v161, %v161
    %v184 = vadd.f32 %v180, %v181
    %v185 = vadd.f32 %v184, %v182
    %v186 = vadd.f32 %v185, %v183
    %v187 = vrot.slane %v186, 4
    %v188 = vadd.f32 %v186, %v187
    %v189 = vrot.slane %v188, 2
    %v190 = vadd.f32 %v188, %v189
    %v191 = vrot.slane %v190, 1
    %v192 = vadd.f32 %v190, %v191
    %v193 = vmul.f32 %v192, %v178
    %v194 = vmul.f32 %v179, %v179
    %v195 = vsub.f32 %v193, %v194
    %v196 = vmax.f32 %v195, 0.0
    %v197 = vadd.f32 %v196, 1e-05
    %v198 = vrsqrt.pop %v197
    %v199 = vmul.f32 %v198, %v197
    %v200 = vmul.f32 %v199, %v198
    %v201 = vmul.f32 0.5, %v200
    %v202 = vsub.f32 1.5, %v201
    %v203 = vmul.f32 %v198, %v202
    %vm204 = vweird.f32 %v197
    %vm205 = vweird.f32 %v198
    %vm206 = vmor %vm204, %vm205
    %v207 = vsel %vm206, %v198, %v203
    %v208 = vsub.f32 %v154, %v179
    %v209 = vsub.f32 %v156, %v179
    %v210 = vsub.f32 %v159, %v179
    %v211 = vsub.f32 %v161, %v179
    %v212 = vmul.f32 %v208, %v207
    %v213 = vmul.f32 %v209, %v207
    %v214 = vmul.f32 %v210, %v207
    %v215 = vmul.f32 %v211, %v207
    %216 = vset.pattern.permute.xlu0 1
    %217 = vperm.xlu0 %216, %v19
    %v218 = vpop.permute.xlu0 %217
    %220 = vset.pattern.permute.xlu0 1
    %221 = vperm.xlu0 %220, %v20
    %v222 = vpop.permute.xlu0 %221
    %224 = vset.pattern.permute.xlu0 1
    %225 = vperm.xlu0 %224, %v21
    %v226 = vpop.permute.xlu0 %225
    %228 = vset.pattern.permute.xlu0 1
    %229 = vperm.xlu0 %228, %v22
    %v230 = vpop.permute.xlu0 %229
    %v232 = vmul.f32 %v212, %v218
    %v233 = vmul.f32 %v213, %v222
    %v234 = vmul.f32 %v214, %v226
    %v235 = vmul.f32 %v215, %v230
    %236 = vset.pattern.permute.xlu0 2
    %237 = vperm.xlu0 %236, %v19
    %v238 = vpop.permute.xlu0 %237
    %240 = vset.pattern.permute.xlu0 2
    %241 = vperm.xlu0 %240, %v20
    %v242 = vpop.permute.xlu0 %241
    %244 = vset.pattern.permute.xlu0 2
    %245 = vperm.xlu0 %244, %v21
    %v246 = vpop.permute.xlu0 %245
    %248 = vset.pattern.permute.xlu0 2
    %249 = vperm.xlu0 %248, %v22
    %v250 = vpop.permute.xlu0 %249
    %v252 = vadd.f32 %v232, %v238
    %v253 = vadd.f32 %v233, %v242
    %v254 = vadd.f32 %v234, %v246
    %v255 = vadd.f32 %v235, %v250
    %v256 = vmax.f32 %v252, 0.0
    %v257 = vmax.f32 %v253, 0.0
    %v258 = vmax.f32 %v254, 0.0
    %v259 = vmax.f32 %v255, 0.0
    %v260 = vld [vmem:[%s2] sm:$0xf]
    %v261 = vld [vmem:[%s2 + $0x4] sm:$0xf]
    %v262 = vpack.c.bf16 %v257, %v256
    %v263 = vpack.c.bf16 %v259, %v258
    %264 = vset.pattern.permute.xlu0 3
    %265 = vperm.xlu0 %264, %v19
    %v266 = vpop.permute.xlu0 %265
    %268 = vset.pattern.permute.xlu0 3
    %269 = vperm.xlu0 %268, %v20
    %v270 = vpop.permute.xlu0 %269
    %v274 = vunpack.c.l.b16 %v260
    %v275 = vunpack.c.l.b16 %v261
    %v276 = vpack.c.b16 %v275, %v274
    %vm277 = vcmask 261120
    %v279 = vsel %vm277, %v276, 0
    %281 = vmatpush.bf16.msra.mxu0 0
    %282 = vmatpush.bf16.msra.mxu0 0
    %283 = vmatpush.bf16.msra.mxu0 0
    %284 = vmatpush.bf16.msra.mxu0 0
    %285 = vmatpush.bf16.msra.mxu0 0
    %286 = vmatpush.bf16.msra.mxu0 0
    %287 = vmatpush.bf16.msra.mxu0 %v263
    %288 = vmatpush.bf16.msra.mxu0 %v262
    %289 = vmatmul.bf16.gmra.mxu0 %v279
    %v290 = vpop.f32.mrf.mxu0
    %v291 = vadd.f32 %v266, %v290
    %v292 = vpop.f32.mrf.mxu0
    %v293 = vadd.f32 %v270, %v292
    %294 = vdwg.mxu0
    %v295 = vadd.f32 %v291, %v293
    %v296 = vrot.slane %v295, 4
    %v297 = vadd.f32 %v295, %v296
    %v298 = vrot.slane %v297, 2
    %v299 = vadd.f32 %v297, %v298
    %v300 = vrot.slane %v299, 1
    %v301 = vadd.f32 %v299, %v300
    %v302 = vrcp.pop 16.0
    %v303 = vmul.f32 16.0, %v302
    %v304 = vsub.f32 1.0, %v303
    %v305 = vmul.f32 %v302, %v304
    %v306 = vadd.f32 %v302, %v305
    %vm307 = vweird.f32 %v302
    %v308 = vsel %vm307, %v302, %v306
    %v309 = vmul.f32 %v301, %v308
    %v310 = vmul.f32 %v291, %v291
    %v311 = vmul.f32 %v293, %v293
    %v312 = vadd.f32 %v310, %v311
    %v313 = vrot.slane %v312, 4
    %v314 = vadd.f32 %v312, %v313
    %v315 = vrot.slane %v314, 2
    %v316 = vadd.f32 %v314, %v315
    %v317 = vrot.slane %v316, 1
    %v318 = vadd.f32 %v316, %v317
    %v319 = vmul.f32 %v318, %v308
    %v320 = vmul.f32 %v309, %v309
    %v321 = vsub.f32 %v319, %v320
    %v322 = vmax.f32 %v321, 0.0
    %v323 = vadd.f32 %v322, 1e-05
    %v324 = vrsqrt.pop %v323
    %v325 = vmul.f32 %v324, %v323
    %v326 = vmul.f32 %v325, %v324
    %v327 = vmul.f32 0.5, %v326
    %v328 = vsub.f32 1.5, %v327
    %v329 = vmul.f32 %v324, %v328
    %vm330 = vweird.f32 %v323
    %vm331 = vweird.f32 %v324
    %vm332 = vmor %vm330, %vm331
    %v333 = vsel %vm332, %v324, %v329
    %v334 = vsub.f32 %v291, %v309
    %v335 = vsub.f32 %v293, %v309
    %v336 = vmul.f32 %v334, %v333
    %v337 = vmul.f32 %v335, %v333
    %338 = vset.pattern.permute.xlu0 4
    %339 = vperm.xlu0 %338, %v19
    %v340 = vpop.permute.xlu0 %339
    %342 = vset.pattern.permute.xlu0 4
    %343 = vperm.xlu0 %342, %v20
    %v344 = vpop.permute.xlu0 %343
    %v346 = vmul.f32 %v336, %v340
    %v347 = vmul.f32 %v337, %v344
    %348 = vset.pattern.permute.xlu0 5
    %349 = vperm.xlu0 %348, %v19
    %v350 = vpop.permute.xlu0 %349
    %352 = vset.pattern.permute.xlu0 5
    %353 = vperm.xlu0 %352, %v20
    %v354 = vpop.permute.xlu0 %353
    %v356 = vadd.f32 %v346, %v350
    %v357 = vadd.f32 %v347, %v354
    %v358 = vmax.f32 %v356, 0.0
    %v359 = vmax.f32 %v357, 0.0
    %360 = vset.pattern.permute.xlu0 6
    %361 = vperm.xlu0 %360, %v19
    %v362 = vpop.permute.xlu0 %361
    %364 = vset.pattern.permute.xlu0 6
    %365 = vperm.xlu0 %364, %v20
    %v366 = vpop.permute.xlu0 %365
    %v368 = vmul.f32 %v358, %v362
    %v369 = vmul.f32 %v359, %v366
    %v370 = vadd.f32 %v368, %v369
    %v371 = vrot.slane %v370, 4
    %v372 = vadd.f32 %v370, %v371
    %v373 = vrot.slane %v372, 2
    %v374 = vadd.f32 %v372, %v373
    %v375 = vrot.slane %v374, 1
    %v376 = vadd.f32 %v374, %v375
    %377 = vset.pattern.permute.xlu0 7
    %378 = vperm.xlu0 %377, %v19
    %v379 = vpop.permute.xlu0 %378
    %v381 = vadd.f32 %v376, %v379
    %382 = vst [vmem:[#allocation2] sm:$0x1] %v381
    // Predicated region
    $region18: #{tpu_custom_call.1} parent=1 // pred_check
      _
    $region19: #{tpu_custom_call.1} parent=1 // pred_check_branch
      %384 = sbr.rel (0) target = $region21
    $region20: #{tpu_custom_call.1} parent=1 // pred_region
      %386 = vsyncadd [#allocation3], 0
      %s388 = sshll.u32 [#allocation2], 4
      %s389 = int_to_ptr.vmem [resolvable:$true] %s388
      %s390 = sshll.u32 %s4, 4
      %s391 = int_to_ptr.hbm [resolvable:$true] %s390
      %393 = dma.vmem_to_hbm [thread:$0]  %s389, 16, %s391, [#allocation3]
    $region21: #{tpu_custom_call.1} parent=1 // pred_fallthru
      _
    // Predicated region
    $region22: #{tpu_custom_call.1} parent=1 // pred_check
      _
    $region23: #{tpu_custom_call.1} parent=1 // pred_check_branch
      %395 = sbr.rel (0) target = $region25
    $region24: #{tpu_custom_call.1} parent=1 // pred_region
      %397 = dma.done [#allocation3], 16
    $region25: #{tpu_custom_call.1} parent=1 // pred_fallthru
      _
    %398 = vsyncpa [#allocation3], 1

</llo_original>
